<compile_context>
chip_gen: v7x
topology: tpu7x:2x2x1
jax: 0.10.0
libtpu: 0.0.40
codegen_flags: <defaults>
</compile_context>

<pallas_src>
import jax
import jax.numpy as jnp
from jax.experimental import pallas as pl
from jax.experimental.pallas import tpu as pltpu


# --------------------------------------------------------------------------
# Kernels
# --------------------------------------------------------------------------
def _rotary_kernel_roll(x_ref, cosw_ref, sinw_ref, o_ref):
    """Lane-dense path (D % 128 == 0).

    x_ref/o_ref: (tT, H, D); cosw_ref/sinw_ref: (tT, D) full-width tables
    cos_w = [cos, cos], sin_w = [sin, -sin].
    """
    x = x_ref[...].astype(jnp.float32)                       # (tT, H, D)
    d = x.shape[-1]
    # roll by D//2 swaps the two halves per head: [x1, x2] -> [x2, x1]
    x_rot = pltpu.roll(x, shift=d // 2, axis=x.ndim - 1)
    cos_w = cosw_ref[...].astype(jnp.float32)[:, None, :]    # (tT, 1, D)
    sin_w = sinw_ref[...].astype(jnp.float32)[:, None, :]
    o_ref[...] = (x * cos_w + x_rot * sin_w).astype(o_ref.dtype)


def _rotary_kernel_halves(x_ref, cos_ref, sin_ref, o_ref):
    """Fallback for small / non-128-multiple D.

    x_ref/o_ref: (tT, H, D); cos_ref/sin_ref: (tT, D//2).
    Writes each output half directly (no concatenated VMEM temp).
    """
    x = x_ref[...].astype(jnp.float32)                       # (tT, H, D)
    half = x.shape[-1] // 2
    x1 = x[:, :, :half]
    x2 = x[:, :, half:]
    cos = cos_ref[...].astype(jnp.float32)[:, None, :]       # (tT, 1, half)
    sin = sin_ref[...].astype(jnp.float32)[:, None, :]
    o_ref[:, :, :half] = (x1 * cos + x2 * sin).astype(o_ref.dtype)
    o_ref[:, :, half:] = (x2 * cos - x1 * sin).astype(o_ref.dtype)


# --------------------------------------------------------------------------
# Table construction (mirrors the PyTorch __init__)
# --------------------------------------------------------------------------
def make_rotary_tables(dim: int, max_seq_len: int):
    n = dim // 4
    angular_freq = (1.0 / 1024.0) ** jnp.linspace(0.0, 1.0, num=n, dtype=jnp.float32)
    angular_freq = jnp.concatenate([angular_freq, jnp.zeros((n,), dtype=jnp.float32)])
    t = jnp.arange(max_seq_len, dtype=jnp.float32)
    theta = jnp.outer(t, angular_freq)                        # (max_seq_len, dim//2)
    return jnp.cos(theta), jnp.sin(theta)


# --------------------------------------------------------------------------
# Wrapper
# --------------------------------------------------------------------------
def _choose_seq_tile(T, H, D, itemsize, max_tile_bytes=2 * 1024 * 1024):
    """Largest T-tile that divides T, keeps one x-tile <= max_tile_bytes and
    is a multiple of 8 (or all of T) so the cos/sin block stays (8,128)-legal."""
    bytes_per_row = H * D * itemsize
    max_rows = max(1, max_tile_bytes // bytes_per_row)
    if T <= max_rows:
        return T
    best = T  # fallback: single tile (only if no aligned divisor fits)
    for cand in range(8, int(min(T, max_rows)) + 1, 8):
        if T % cand == 0:
            best = cand
    return best


def rotary_forward(x, cos_full, sin_full):
    """x: (B, T, H, D).  cos_full/sin_full: (max_seq_len, D//2) float32."""
    B, T, H, D = x.shape
    assert D % 2 == 0, "head_dim must be even"
    assert T <= cos_full.shape[0], "sequence length exceeds rotary table size"

    itemsize = jnp.dtype(x.dtype).itemsize
    tT = _choose_seq_tile(T, H, D, itemsize)
    grid = (B, T // tT)

    cos = cos_full[:T]
    sin = sin_full[:T]

    lane_dense = (D % 128) == 0
    if lane_dense:
        # Full-width tables: y = x * [cos,cos] + roll(x, D//2) * [sin,-sin]
        cos_t = jnp.concatenate([cos, cos], axis=-1).astype(x.dtype)   # (T, D)
        sin_t = jnp.concatenate([sin, -sin], axis=-1).astype(x.dtype)  # (T, D)
        kernel = _rotary_kernel_roll
    else:
        cos_t = cos.astype(x.dtype)                                    # (T, D//2)
        sin_t = sin.astype(x.dtype)
        kernel = _rotary_kernel_halves
    Dt = cos_t.shape[-1]

    xo_spec = lambda: pl.BlockSpec(
        (pl.Squeezed(), tT, H, D), lambda b, t: (b, t, 0, 0)
    )
    tbl_spec = lambda: pl.BlockSpec((tT, Dt), lambda b, t: (t, 0))

    return pl.pallas_call(
        kernel,
        out_shape=jax.ShapeDtypeStruct((B, T, H, D), x.dtype),
        grid_spec=pltpu.PrefetchScalarGridSpec(
            num_scalar_prefetch=0,
            grid=grid,
            in_specs=[xo_spec(), tbl_spec(), tbl_spec()],
            out_specs=xo_spec(),
        ),
        compiler_params=pltpu.CompilerParams(
            dimension_semantics=("parallel", "parallel"),
            vmem_limit_bytes=32 * 1024 * 1024,
        ),
    )(x, cos_t, sin_t)


# --------------------------------------------------------------------------
# Pure-JAX reference (matches the PyTorch forward, position_ids=None path)
# --------------------------------------------------------------------------
def rotary_reference(x, cos_full, sin_full):
    B, T, H, D = x.shape
    cos = cos_full[:T][None, :, None, :]
    sin = sin_full[:T][None, :, None, :]
    x1, x2 = x[..., : D // 2], x[..., D // 2:]
    y1 = x1 * cos + x2 * sin
    y2 = -x1 * sin + x2 * cos
    return jnp.concatenate([y1, y2], axis=-1)


if __name__ == "__main__":
    key = jax.random.PRNGKey(0)
    k1, k2 = jax.random.split(key)
    max_seq_len = 16
    B, T, H = 2, 8, 4

    # --- small-D path (D=32): direct half-writes kernel ---------------------
    D = 32
    x_small = jax.random.normal(k1, (B, T, H, D), dtype=jnp.float32)
    cos_s, sin_s = make_rotary_tables(D, max_seq_len)
    out_s = jax.block_until_ready(rotary_forward(x_small, cos_s, sin_s))
    ref_s = rotary_reference(x_small, cos_s, sin_s)
    assert out_s.shape == (B, T, H, D)
    assert jnp.allclose(out_s, ref_s, atol=1e-5, rtol=1e-5)

    # --- lane-dense path (D=128): roll + full-width tables kernel ------------
    D2 = 128
    x_big = jax.random.normal(k2, (B, T, H, D2), dtype=jnp.float32)
    cos_b, sin_b = make_rotary_tables(D2, max_seq_len)
    out_b = jax.block_until_ready(rotary_forward(x_big, cos_b, sin_b))
    ref_b = rotary_reference(x_big, cos_b, sin_b)
    assert out_b.shape == (B, T, H, D2)
    assert jnp.allclose(out_b, ref_b, atol=1e-5, rtol=1e-5)

    print("KERNEL_OK")
</pallas_src>

<mosaic_0001>
module attributes {stable_mosaic.version = 11 : i64} {
  func.func @_rotary_kernel_halves(%arg0: i32, %arg1: i32, %arg2: memref<1x8x4x32xf32, #tpu.memory_space<vmem>>, %arg3: memref<8x16xf32, #tpu.memory_space<vmem>>, %arg4: memref<8x16xf32, #tpu.memory_space<vmem>>, %arg5: memref<1x8x4x32xf32, #tpu.memory_space<vmem>>) attributes {dimension_semantics = [#tpu.dimension_semantics<parallel>, #tpu.dimension_semantics<parallel>], iteration_bounds = array<i64: 2, 1>, scalar_prefetch = 0 : i64, scratch_operands = 0 : i64, tpu.core_type = #tpu.core_type<tc>, window_params = [{transform_indices = @transform_0, window_bounds = array<i64: 1, 8, 4, 32>}, {transform_indices = @transform_1, window_bounds = array<i64: 8, 16>}, {transform_indices = @transform_2, window_bounds = array<i64: 8, 16>}, {transform_indices = @transform_3, window_bounds = array<i64: 1, 8, 4, 32>}]} {
    %c0 = arith.constant 0 : index
    %c0_0 = arith.constant 0 : index
    %c0_1 = arith.constant 0 : index
    %c0_2 = arith.constant 0 : index
    %0 = vector.load %arg2[%c0, %c0_0, %c0_1, %c0_2] : memref<1x8x4x32xf32, #tpu.memory_space<vmem>>, vector<1x8x4x32xf32>
    %1 = vector.shape_cast %0 : vector<1x8x4x32xf32> to vector<8x4x32xf32>
    %2 = vector.extract_strided_slice %1 {offsets = [0, 0, 0], sizes = [8, 4, 16], strides = [1, 1, 1]} : vector<8x4x32xf32> to vector<8x4x16xf32>
    %3 = vector.extract_strided_slice %1 {offsets = [0, 0, 16], sizes = [8, 4, 16], strides = [1, 1, 1]} : vector<8x4x32xf32> to vector<8x4x16xf32>
    %c0_3 = arith.constant 0 : index
    %c0_4 = arith.constant 0 : index
    %4 = vector.load %arg3[%c0_3, %c0_4] : memref<8x16xf32, #tpu.memory_space<vmem>>, vector<8x16xf32>
    %5 = vector.shape_cast %4 : vector<8x16xf32> to vector<8x1x16xf32>
    %c0_5 = arith.constant 0 : index
    %c0_6 = arith.constant 0 : index
    %6 = vector.load %arg4[%c0_5, %c0_6] : memref<8x16xf32, #tpu.memory_space<vmem>>, vector<8x16xf32>
    %7 = vector.shape_cast %6 : vector<8x16xf32> to vector<8x1x16xf32>
    %8 = vector.broadcast %5 : vector<8x1x16xf32> to vector<8x4x16xf32>
    %9 = arith.mulf %2, %8 : vector<8x4x16xf32>
    %10 = vector.broadcast %7 : vector<8x1x16xf32> to vector<8x4x16xf32>
    %11 = arith.mulf %3, %10 : vector<8x4x16xf32>
    %12 = arith.addf %9, %11 : vector<8x4x16xf32>
    %c0_7 = arith.constant 0 : index
    %c0_8 = arith.constant 0 : index
    %c0_9 = arith.constant 0 : index
    %c0_10 = arith.constant 0 : index
    %13 = vector.load %arg5[%c0_7, %c0_8, %c0_9, %c0_10] : memref<1x8x4x32xf32, #tpu.memory_space<vmem>>, vector<1x8x4x16xf32>
    %14 = vector.shape_cast %13 : vector<1x8x4x16xf32> to vector<8x4x16xf32>
    %15 = vector.shape_cast %12 : vector<8x4x16xf32> to vector<1x8x4x16xf32>
    tpu.vector_store %arg5[%c0_7, %c0_8, %c0_9, %c0_10], %15 {strides = array<i32>} : memref<1x8x4x32xf32, #tpu.memory_space<vmem>>, vector<1x8x4x16xf32>,
    %16 = vector.broadcast %5 : vector<8x1x16xf32> to vector<8x4x16xf32>
    %17 = arith.mulf %3, %16 : vector<8x4x16xf32>
    %18 = vector.broadcast %7 : vector<8x1x16xf32> to vector<8x4x16xf32>
    %19 = arith.mulf %2, %18 : vector<8x4x16xf32>
    %20 = arith.subf %17, %19 : vector<8x4x16xf32>
    %c0_11 = arith.constant 0 : index
    %c0_12 = arith.constant 0 : index
    %c0_13 = arith.constant 0 : index
    %c16 = arith.constant 16 : index
    %21 = vector.load %arg5[%c0_11, %c0_12, %c0_13, %c16] : memref<1x8x4x32xf32, #tpu.memory_space<vmem>>, vector<1x8x4x16xf32>
    %22 = vector.shape_cast %21 : vector<1x8x4x16xf32> to vector<8x4x16xf32>
    %23 = vector.shape_cast %20 : vector<8x4x16xf32> to vector<1x8x4x16xf32>
    tpu.vector_store %arg5[%c0_11, %c0_12, %c0_13, %c16], %23 {strides = array<i32>} : memref<1x8x4x32xf32, #tpu.memory_space<vmem>>, vector<1x8x4x16xf32>,
    return
  }
  func.func @transform_0(%arg0: i32, %arg1: i32) -> (i32, i32, i32, i32) {
    %c0_i32 = arith.constant 0 : i32
    %c0_i32_0 = arith.constant 0 : i32
    %c0_i32_1 = arith.constant 0 : i32
    return %arg0, %arg1, %c0_i32, %c0_i32_0 : i32, i32, i32, i32
  }
  func.func @transform_1(%arg0: i32, %arg1: i32) -> (i32, i32) {
    %c0_i32 = arith.constant 0 : i32
    %c0_i32_0 = arith.constant 0 : i32
    return %arg1, %c0_i32 : i32, i32
  }
  func.func @transform_2(%arg0: i32, %arg1: i32) -> (i32, i32) {
    %c0_i32 = arith.constant 0 : i32
    %c0_i32_0 = arith.constant 0 : i32
    return %arg1, %c0_i32 : i32, i32
  }
  func.func @transform_3(%arg0: i32, %arg1: i32) -> (i32, i32, i32, i32) {
    %c0_i32 = arith.constant 0 : i32
    %c0_i32_0 = arith.constant 0 : i32
    %c0_i32_1 = arith.constant 0 : i32
    return %arg0, %arg1, %c0_i32, %c0_i32_0 : i32, i32, i32, i32
  }
}

</mosaic_0001>

<llo_original>
// kernel: tpu_custom_call.1
$region0: #{tpu_custom_call.1}
  #allocation0 [shape = 'u32[]', space=smem, size = 0x4, offset = 0x4, fixed_abs, tag = 'smem constant byte address 0x4 - core index']
  #allocation1 [shape = 'u32[144,128]{1,0:T(1,128)}', space=vmem, size = 0x12000, scoped, tag = 'internal scratch']
  %s0 = inlined_call_operand.hbm [shape: f32[2,8,4,32], index: 0, kind: input, shape index: {}]
  %s1 = inlined_call_operand.hbm [shape: f32[8,16], index: 1, kind: input, shape index: {}]
  %s2 = inlined_call_operand.hbm [shape: f32[8,16], index: 2, kind: input, shape index: {}]
  %s3 = inlined_call_operand.hbm [shape: f32[2,8,4,32], index: 3, kind: output, shape index: {}]
  %s4 = sld [smem:[#allocation0]]
  $region57: #{tpu_custom_call.1} parent=0
    _
  %s6 = ssub.s32 1, %s4
  %s7 = scalar_select 0, %s6, %s4
  $region1: #{tpu_custom_call.1} parent=0
    #allocation2 [shape = 'u8[32768]{0}', space=vmem, size = 0x8000, scoped, tag = 'input window, operand 0']
    #allocation3 [shape = 's32[2]{0}', space=sflag, size = 0x8, scoped, tag = 'scoped memory for tpu_custom_call.1']
    #allocation4 [shape = 's32[2]{0}', space=sflag, size = 0x8, scoped, tag = 'scoped memory for tpu_custom_call.1']
    #allocation5 [shape = 'u8[4096]{0}', space=vmem, size = 0x1000, scoped, tag = 'input window, operand 1, single buffered']
    #allocation6 [shape = 's32[1]{0}', space=sflag, size = 0x4, scoped, tag = 'scoped memory for tpu_custom_call.1']
    #allocation7 [shape = 'u8[4096]{0}', space=vmem, size = 0x1000, scoped, tag = 'input window, operand 2, single buffered']
    #allocation8 [shape = 'u8[32768]{0}', space=vmem, size = 0x8000, scoped, tag = 'output window, operand 0']
    %8 = vsyncpa [#allocation3], 0
    %s9 = scalar_lea.sflag [#allocation3], 1
    %10 = vsyncpa %s9, 0
    %11 = vsyncpa [#allocation6], 0
    %12 = vsyncpa [#allocation4], 0
    %s13 = scalar_lea.sflag [#allocation4], 1
    %14 = vsyncpa %s13, 0
    loop: start=0, step=1, limit=4
    $region2: #{tpu_custom_call.1} parent=1 // loop_pre_header
      _
    $region3: #{tpu_custom_call.1} parent=1 // loop_header
      %s16 = sphi 0, %s20
      %p17 = scmp.ge.s32.totalorder %s16, 4
      %s23 = sphi 0, %s35
      %s24 = sphi 0, %s31
      %s25 = sphi 0, %s23
      %s26 = sphi 0, %s24
      %s27 = sphi 0, %s25
      %s28 = sphi 0, %s26
      %s40 = sphi 0, %s42
      %s43 = sphi 0, %s40
      %s44 = sphi 0, %s43
      %s60 = sphi 0, %s44
      %s66 = sphi 0, %s68
      %s69 = sphi 0, %s66
      %s70 = sphi 0, %s69
      %s86 = sphi 0, %s70
      %s92 = sphi 0, %s94
      %s95 = sphi 0, %s92
      %s96 = sphi 0, %s95
      %s112 = sphi 0, %s96
      %s120 = sphi 0, %s122
      %s123 = sphi 0, %s120
      %s124 = sphi 0, %s123
      %s140 = sphi 0, %s124
    $region4: #{tpu_custom_call.1} parent=1 // loop_header_branch
      %19 = sbr.rel (%p17) target = $region8
    $region5: #{tpu_custom_call.1} parent=1 // loop_body
      %s21 = ssub.s32 %s16, 1
      %s22 = ssub.s32 %s16, 2
      %s29 = sadd.s32 1, %s24
      %p30 = scmp.ge.s32.totalorder %s29, 1
      %s31 = scalar_select %p30, 0, %s29
      %s32 = sadd.s32 1, %s23
      %s33 = scalar_select %p30, %s32, %s23
      %p34 = scmp.ge.s32.totalorder %s33, 2
      %s35 = scalar_select %p34, 0, %s33
      %s36 = ssub.s32 %s23, %s35
      %s37 = ssub.s32 %s24, %s31
      %s38 = sor.u32 %s36, %s37
      %p39 = scmp.eq.s32.totalorder %s38, 0
      %s41 = sadd.s32 %s40, 1
      %s42 = scalar_select %p39, %s40, %s41
      %p45 = pneg %p39
      %p46 = scmp.eq.s32.totalorder %s16, 1
      %p47 = por %p45, %p46
      %p48 = scmp.ne.s32.totalorder %s40, %s43
      %p49 = scmp.eq.s32.totalorder %s16, 0
      %p50 = por %p48, %p49
      %p51 = scmp.ne.s32.totalorder %s40, %s43
      %p52 = scmp.eq.s32.totalorder %s21, 1
      %p53 = por %p51, %p52
      %p54 = scmp.ne.s32.totalorder %s43, %s44
      %p55 = scmp.eq.s32.totalorder %s21, 0
      %p56 = por %p54, %p55
      %p57 = scmp.ne.s32.totalorder %s43, %s44
      %p58 = scmp.eq.s32.totalorder %s22, 1
      %p59 = por %p57, %p58
      %p61 = scmp.ne.s32.totalorder %s44, %s60
      %p62 = scmp.eq.s32.totalorder %s22, 0
      %p63 = por %p61, %p62
      %s64 = ssub.s32 %s24, %s31
      %p65 = scmp.eq.s32.totalorder %s64, 0
      %s67 = sadd.s32 %s66, 1
      %s68 = scalar_select %p65, %s66, %s67
      %p71 = pneg %p65
      %p72 = scmp.eq.s32.totalorder %s16, 1
      %p73 = por %p71, %p72
      %p74 = scmp.ne.s32.totalorder %s66, %s69
      %p75 = scmp.eq.s32.totalorder %s16, 0
      %p76 = por %p74, %p75
      %p77 = scmp.ne.s32.totalorder %s66, %s69
      %p78 = scmp.eq.s32.totalorder %s21, 1
      %p79 = por %p77, %p78
      %p80 = scmp.ne.s32.totalorder %s69, %s70
      %p81 = scmp.eq.s32.totalorder %s21, 0
      %p82 = por %p80, %p81
      %p83 = scmp.ne.s32.totalorder %s69, %s70
      %p84 = scmp.eq.s32.totalorder %s22, 1
      %p85 = por %p83, %p84
      %p87 = scmp.ne.s32.totalorder %s70, %s86
      %p88 = scmp.eq.s32.totalorder %s22, 0
      %p89 = por %p87, %p88
      %s90 = ssub.s32 %s24, %s31
      %p91 = scmp.eq.s32.totalorder %s90, 0
      %s93 = sadd.s32 %s92, 1
      %s94 = scalar_select %p91, %s92, %s93
      %p97 = pneg %p91
      %p98 = scmp.eq.s32.totalorder %s16, 1
      %p99 = por %p97, %p98
      %p100 = scmp.ne.s32.totalorder %s92, %s95
      %p101 = scmp.eq.s32.totalorder %s16, 0
      %p102 = por %p100, %p101
      %p103 = scmp.ne.s32.totalorder %s92, %s95
      %p104 = scmp.eq.s32.totalorder %s21, 1
      %p105 = por %p103, %p104
      %p106 = scmp.ne.s32.totalorder %s95, %s96
      %p107 = scmp.eq.s32.totalorder %s21, 0
      %p108 = por %p106, %p107
      %p109 = scmp.ne.s32.totalorder %s95, %s96
      %p110 = scmp.eq.s32.totalorder %s22, 1
      %p111 = por %p109, %p110
      %p113 = scmp.ne.s32.totalorder %s96, %s112
      %p114 = scmp.eq.s32.totalorder %s22, 0
      %p115 = por %p113, %p114
      %s116 = ssub.s32 %s23, %s35
      %s117 = ssub.s32 %s24, %s31
      %s118 = sor.u32 %s116, %s117
      %p119 = scmp.eq.s32.totalorder %s118, 0
      %s121 = sadd.s32 %s120, 1
      %s122 = scalar_select %p119, %s120, %s121
      %p125 = pneg %p119
      %p126 = scmp.eq.s32.totalorder %s16, 1
      %p127 = por %p125, %p126
      %p128 = scmp.ne.s32.totalorder %s120, %s123
      %p129 = scmp.eq.s32.totalorder %s16, 0
      %p130 = por %p128, %p129
      %p131 = scmp.ne.s32.totalorder %s120, %s123
      %p132 = scmp.eq.s32.totalorder %s21, 1
      %p133 = por %p131, %p132
      %p134 = scmp.ne.s32.totalorder %s123, %s124
      %p135 = scmp.eq.s32.totalorder %s21, 0
      %p136 = por %p134, %p135
      %p137 = scmp.ne.s32.totalorder %s123, %s124
      %p138 = scmp.eq.s32.totalorder %s22, 1
      %p139 = por %p137, %p138
      %p141 = scmp.ne.s32.totalorder %s124, %s140
      %p142 = scmp.eq.s32.totalorder %s22, 0
      %p143 = por %p141, %p142
      %p144 = scmp.le.s32.totalorder 1, %s16
      %p145 = scmp.lt.s32.totalorder %s16, 3
      %p146 = pnand %p144, %p145
      %p147 = pneg %p146
      // Predicated region
      $region9: #{tpu_custom_call.1} parent=5 // pred_check
        _
      $region10: #{tpu_custom_call.1} parent=5 // pred_check_branch
        %149 = sbr.rel (%p146) target = $region12
      $region11: #{tpu_custom_call.1} parent=5 // pred_region
        %s150 = ssub.s32 %s16, 1
        // Predicated region
        $region13: #{tpu_custom_call.1} parent=11 // pred_check
          %p151 = pneg %p82
        $region14: #{tpu_custom_call.1} parent=11 // pred_check_branch
          %153 = sbr.rel (%p151) target = $region16
        $region15: #{tpu_custom_call.1} parent=11 // pred_region
          %s155 = ssub.s32 128, 128
          %156 = vsyncadd [#allocation6], %s155
          %s157 = smul.addr %s26, 128
          %s158 = scalar_lea.hbm %s1, %s157
          %s160 = sshll.u32 [#allocation5], 4
          %s161 = int_to_ptr.vmem [resolvable:$true] %s160
          %163 = dma.hbm_to_vmem [thread:$0]  %s158, 128, %s161, [#allocation6]
        $region16: #{tpu_custom_call.1} parent=11 // pred_fallthru
          _
        // Predicated region
        $region17: #{tpu_custom_call.1} parent=11 // pred_check
          %p164 = pneg %p108
        $region18: #{tpu_custom_call.1} parent=11 // pred_check_branch
          %166 = sbr.rel (%p164) target = $region20
        $region19: #{tpu_custom_call.1} parent=11 // pred_region
          %s168 = ssub.s32 128, 128
          %169 = vsyncadd [#allocation6], %s168
          %s170 = smul.addr %s26, 128
          %s171 = scalar_lea.hbm %s2, %s170
          %s173 = sshll.u32 [#allocation7], 4
          %s174 = int_to_ptr.vmem [resolvable:$true] %s173
          %176 = dma.hbm_to_vmem [thread:$0]  %s171, 128, %s174, [#allocation6]
        $region20: #{tpu_custom_call.1} parent=11 // pred_fallthru
          _
      $region12: #{tpu_custom_call.1} parent=5 // pred_fallthru
        _
      %p177 = scmp.lt.s32.totalorder %s16, 2
      // Predicated region
      $region21: #{tpu_custom_call.1} parent=5 // pred_check
        %p178 = pneg %p177
      $region22: #{tpu_custom_call.1} parent=5 // pred_check_branch
        %180 = sbr.rel (%p178) target = $region24
      $region23: #{tpu_custom_call.1} parent=5 // pred_region
        // Predicated region
        $region25: #{tpu_custom_call.1} parent=23 // pred_check
          %p181 = pneg %p50
        $region26: #{tpu_custom_call.1} parent=23 // pred_check_branch
          %183 = sbr.rel (%p181) target = $region28
        $region27: #{tpu_custom_call.1} parent=23 // pred_region
          %s184 = sand.u32 %s40, 1
          %s185 = scalar_lea.sflag [#allocation3], %s184
          %s186 = sand.u32 %s40, 1
          %s187 = smul.addr %s186, 32
          %s188 = scalar_lea.vmem [#allocation2], %s187
          %s189 = smul.u32 8, %s24
          %s191 = ssub.s32 512, 512
          %192 = vsyncadd %s185, %s191
          %s193 = smul.addr %s23, 8
          %s194 = sadd.s32 %s189, %s193
          %s195 = smul.addr %s194, 64
          %s196 = scalar_lea.hbm %s0, %s195
          %s197 = sshll.u32 %s188, 4
          %s198 = int_to_ptr.vmem [resolvable:$true] %s197
          %203 = dma.hbm_to_vmem [thread:$0]  %s196, 512, %s198, %s185, 64, 64, 4
        $region28: #{tpu_custom_call.1} parent=23 // pred_fallthru
          _
      $region24: #{tpu_custom_call.1} parent=5 // pred_fallthru
        _
      %p204 = scmp.le.s32.totalorder 1, %s16
      %p205 = scmp.lt.s32.totalorder %s16, 3
      %p206 = pnand %p204, %p205
      %p207 = pneg %p206
      // Predicated region
      $region29: #{tpu_custom_call.1} parent=5 // pred_check
        _
      $region30: #{tpu_custom_call.1} parent=5 // pred_check_branch
        %209 = sbr.rel (%p206) target = $region32
      $region31: #{tpu_custom_call.1} parent=5 // pred_region
        %s210 = ssub.s32 %s16, 1
        %s211 = sand.u32 %s43, 1
        %s212 = scalar_lea.sflag [#allocation3], %s211
        %s213 = sand.u32 %s43, 1
        %s214 = smul.addr %s213, 32
        %s215 = scalar_lea.vmem [#allocation2], %s214
        // Predicated region
        $region33: #{tpu_custom_call.1} parent=31 // pred_check
          %p216 = pneg %p56
        $region34: #{tpu_custom_call.1} parent=31 // pred_check_branch
          %218 = sbr.rel (%p216) target = $region36
        $region35: #{tpu_custom_call.1} parent=31 // pred_region
          %219 = dma.done %s212, 512
        $region36: #{tpu_custom_call.1} parent=31 // pred_fallthru
          _
        // Predicated region
        $region37: #{tpu_custom_call.1} parent=31 // pred_check
          %p220 = pneg %p82
        $region38: #{tpu_custom_call.1} parent=31 // pred_check_branch
          %222 = sbr.rel (%p220) target = $region40
        $region39: #{tpu_custom_call.1} parent=31 // pred_region
          %223 = dma.done [#allocation6], 128
        $region40: #{tpu_custom_call.1} parent=31 // pred_fallthru
          _
        // Predicated region
        $region41: #{tpu_custom_call.1} parent=31 // pred_check
          %p224 = pneg %p108
        $region42: #{tpu_custom_call.1} parent=31 // pred_check_branch
          %226 = sbr.rel (%p224) target = $region44
        $region43: #{tpu_custom_call.1} parent=31 // pred_region
          %227 = dma.done [#allocation6], 128
        $region44: #{tpu_custom_call.1} parent=31 // pred_fallthru
          _
        %s228 = sand.u32 %s43, 1
        %s229 = scalar_lea.sflag [#allocation3], %s228
        %s230 = sand.u32 %s43, 1
        %s231 = smul.addr %s230, 32
        %s232 = scalar_lea.vmem [#allocation2], %s231
        %p233 = pneg %p56
        %p234 = pneg %p53
        %p235 = pneg %p82
        %p236 = pneg %p79
        %p237 = pneg %p108
        %p238 = pneg %p105
        %p239 = pneg %p136
        %p240 = pneg %p133
        %s241 = sand.u32 %s123, 1
        %s242 = scalar_lea.sflag [#allocation4], %s241
        %s243 = sand.u32 %s123, 1
        %s244 = smul.addr %s243, 32
        %s245 = scalar_lea.vmem [#allocation8], %s244
        %s246 = smul.u32 8, %s26
        %s247 = smul.u32 8, %s26
        %v248 = vld [vmem:[%s215] sm:$0xf]
        %v249 = vld [vmem:[%s215 + $0x4] sm:$0xf]
        %v250 = vld [vmem:[%s215 + $0x8] sm:$0xf]
        %v251 = vld [vmem:[%s215 + $0xc] sm:$0xf]
        %v252 = vld [vmem:[%s215 + $0x10] sm:$0xf]
        %v253 = vld [vmem:[%s215 + $0x14] sm:$0xf]
        %v254 = vld [vmem:[%s215 + $0x18] sm:$0xf]
        %v255 = vld [vmem:[%s215 + $0x1c] sm:$0xf]
        %v256 = vld [vmem:[#allocation5] sm:$0xff]
        %v258 = vcombine.high %v256, %v256
        %v260 = vunpack.c.l.s4 1966171168
        %v261 = vunpack.c.0.s8 %v260
        %v262 = vlaneseq
        %v263 = vshrl.u32 %v262, 7
        %v264 = vsub.s32 %v261, %v263
        %v265 = vrot.slane %v256, %v264
        %v267 = vunpack.c.l.s4 1966171168
        %v268 = vunpack.c.0.s8 %v267
        %v269 = vlaneseq
        %v270 = vshrl.u32 %v269, 7
        %v271 = vsub.s32 %v268, %v270
        %v272 = vrot.slane %v258, %v271
        %v273 = vcombine.high %v265, %v265
        %v274 = vcombine.high %v272, %v272
        %v276 = vunpack.c.l.s4 1966171168
        %v277 = vunpack.c.0.s8 %v276
        %v278 = vlaneseq
        %v279 = vshrl.u32 %v278, 7
        %v280 = vsub.s32 %v277, %v279
        %v281 = vrot.slane %v265, %v280
        %v283 = vunpack.c.l.s4 1966171168
        %v284 = vunpack.c.0.s8 %v283
        %v285 = vlaneseq
        %v286 = vshrl.u32 %v285, 7
        %v287 = vsub.s32 %v284, %v286
        %v288 = vrot.slane %v272, %v287
        %v290 = vunpack.c.l.s4 1966171168
        %v291 = vunpack.c.0.s8 %v290
        %v292 = vlaneseq
        %v293 = vshrl.u32 %v292, 7
        %v294 = vsub.s32 %v291, %v293
        %v295 = vrot.slane %v273, %v294
        %v297 = vunpack.c.l.s4 1966171168
        %v298 = vunpack.c.0.s8 %v297
        %v299 = vlaneseq
        %v300 = vshrl.u32 %v299, 7
        %v301 = vsub.s32 %v298, %v300
        %v302 = vrot.slane %v274, %v301
        %v303 = vcombine.high %v281, %v281
        %v304 = vcombine.high %v288, %v288
        %v305 = vcombine.high %v295, %v295
        %v306 = vcombine.high %v302, %v302
        %v307 = vld [vmem:[#allocation7] sm:$0xff]
        %v309 = vcombine.high %v307, %v307
        %v311 = vunpack.c.l.s4 1966171168
        %v312 = vunpack.c.0.s8 %v311
        %v313 = vlaneseq
        %v314 = vshrl.u32 %v313, 7
        %v315 = vsub.s32 %v312, %v314
        %v316 = vrot.slane %v307, %v315
        %v318 = vunpack.c.l.s4 1966171168
        %v319 = vunpack.c.0.s8 %v318
        %v320 = vlaneseq
        %v321 = vshrl.u32 %v320, 7
        %v322 = vsub.s32 %v319, %v321
        %v323 = vrot.slane %v309, %v322
        %v324 = vcombine.high %v316, %v316
        %v325 = vcombine.high %v323, %v323
        %v327 = vunpack.c.l.s4 1966171168
        %v328 = vunpack.c.0.s8 %v327
        %v329 = vlaneseq
        %v330 = vshrl.u32 %v329, 7
        %v331 = vsub.s32 %v328, %v330
        %v332 = vrot.slane %v316, %v331
        %v334 = vunpack.c.l.s4 1966171168
        %v335 = vunpack.c.0.s8 %v334
        %v336 = vlaneseq
        %v337 = vshrl.u32 %v336, 7
        %v338 = vsub.s32 %v335, %v337
        %v339 = vrot.slane %v323, %v338
        %v341 = vunpack.c.l.s4 1966171168
        %v342 = vunpack.c.0.s8 %v341
        %v343 = vlaneseq
        %v344 = vshrl.u32 %v343, 7
        %v345 = vsub.s32 %v342, %v344
        %v346 = vrot.slane %v324, %v345
        %v348 = vunpack.c.l.s4 1966171168
        %v349 = vunpack.c.0.s8 %v348
        %v350 = vlaneseq
        %v351 = vshrl.u32 %v350, 7
        %v352 = vsub.s32 %v349, %v351
        %v353 = vrot.slane %v325, %v352
        %v354 = vcombine.high %v332, %v332
        %v355 = vcombine.high %v339, %v339
        %v356 = vcombine.high %v346, %v346
        %v357 = vcombine.high %v353, %v353
        %v358 = vlaneseq
        %v359 = vshrl.u32 %v358, 7
        %v360 = vsub.s32 0, %v359
        %v361 = vrot.slane %v281, %v360
        %v362 = vlaneseq
        %v363 = vshrl.u32 %v362, 7
        %v364 = vsub.s32 0, %v363
        %v365 = vrot.slane %v295, %v364
        %v366 = vlaneseq
        %v367 = vshrl.u32 %v366, 7
        %v368 = vsub.s32 0, %v367
        %v369 = vrot.slane %v303, %v368
        %v370 = vlaneseq
        %v371 = vshrl.u32 %v370, 7
        %v372 = vsub.s32 0, %v371
        %v373 = vrot.slane %v305, %v372
        %v374 = vlaneseq
        %v375 = vshrl.u32 %v374, 7
        %v376 = vsub.s32 0, %v375
        %v377 = vrot.slane %v288, %v376
        %v378 = vlaneseq
        %v379 = vshrl.u32 %v378, 7
        %v380 = vsub.s32 0, %v379
        %v381 = vrot.slane %v302, %v380
        %v382 = vlaneseq
        %v383 = vshrl.u32 %v382, 7
        %v384 = vsub.s32 0, %v383
        %v385 = vrot.slane %v304, %v384
        %v386 = vlaneseq
        %v387 = vshrl.u32 %v386, 7
        %v388 = vsub.s32 0, %v387
        %v389 = vrot.slane %v306, %v388
        %v398 = vmul.f32 %v248, %v361
        %v399 = vmul.f32 %v249, %v365
        %v400 = vmul.f32 %v250, %v369
        %v401 = vmul.f32 %v251, %v373
        %v402 = vmul.f32 %v252, %v377
        %v403 = vmul.f32 %v253, %v381
        %v404 = vmul.f32 %v254, %v385
        %v405 = vmul.f32 %v255, %v389
        %v406 = vlaneseq
        %v407 = vshrl.u32 %v406, 7
        %v408 = vsub.s32 0, %v407
        %v409 = vrot.slane %v332, %v408
        %v410 = vlaneseq
        %v411 = vshrl.u32 %v410, 7
        %v412 = vsub.s32 0, %v411
        %v413 = vrot.slane %v346, %v412
        %v414 = vlaneseq
        %v415 = vshrl.u32 %v414, 7
        %v416 = vsub.s32 0, %v415
        %v417 = vrot.slane %v354, %v416
        %v418 = vlaneseq
        %v419 = vshrl.u32 %v418, 7
        %v420 = vsub.s32 0, %v419
        %v421 = vrot.slane %v356, %v420
        %v422 = vlaneseq
        %v423 = vshrl.u32 %v422, 7
        %v424 = vsub.s32 0, %v423
        %v425 = vrot.slane %v339, %v424
        %v426 = vlaneseq
        %v427 = vshrl.u32 %v426, 7
        %v428 = vsub.s32 0, %v427
        %v429 = vrot.slane %v353, %v428
        %v430 = vlaneseq
        %v431 = vshrl.u32 %v430, 7
        %v432 = vsub.s32 0, %v431
        %v433 = vrot.slane %v355, %v432
        %v434 = vlaneseq
        %v435 = vshrl.u32 %v434, 7
        %v436 = vsub.s32 0, %v435
        %v437 = vrot.slane %v357, %v436
        %446 = vrot.lane.b32.xlu0 %v409, 16
        %v447 = vpop.permute.xlu0 %446
        %448 = vrot.lane.b32.xlu0 %v413, 16
        %v449 = vpop.permute.xlu0 %448
        %450 = vrot.lane.b32.xlu0 %v417, 16
        %v451 = vpop.permute.xlu0 %450
        %452 = vrot.lane.b32.xlu0 %v421, 16
        %v453 = vpop.permute.xlu0 %452
        %454 = vrot.lane.b32.xlu0 %v425, 16
        %v455 = vpop.permute.xlu0 %454
        %456 = vrot.lane.b32.xlu0 %v429, 16
        %v457 = vpop.permute.xlu0 %456
        %458 = vrot.lane.b32.xlu0 %v433, 16
        %v459 = vpop.permute.xlu0 %458
        %460 = vrot.lane.b32.xlu0 %v437, 16
        %v461 = vpop.permute.xlu0 %460
        %v470 = vmul.f32 %v248, %v447
        %v471 = vmul.f32 %v249, %v449
        %v472 = vmul.f32 %v250, %v451
        %v473 = vmul.f32 %v251, %v453
        %v474 = vmul.f32 %v252, %v455
        %v475 = vmul.f32 %v253, %v457
        %v476 = vmul.f32 %v254, %v459
        %v477 = vmul.f32 %v255, %v461
        %486 = vrot.lane.b32.xlu0 %v470, 112
        %v487 = vpop.permute.xlu0 %486
        %488 = vrot.lane.b32.xlu0 %v471, 112
        %v489 = vpop.permute.xlu0 %488
        %490 = vrot.lane.b32.xlu0 %v472, 112
        %v491 = vpop.permute.xlu0 %490
        %492 = vrot.lane.b32.xlu0 %v473, 112
        %v493 = vpop.permute.xlu0 %492
        %494 = vrot.lane.b32.xlu0 %v474, 112
        %v495 = vpop.permute.xlu0 %494
        %496 = vrot.lane.b32.xlu0 %v475, 112
        %v497 = vpop.permute.xlu0 %496
        %498 = vrot.lane.b32.xlu0 %v476, 112
        %v499 = vpop.permute.xlu0 %498
        %500 = vrot.lane.b32.xlu0 %v477, 112
        %v501 = vpop.permute.xlu0 %500
        %v510 = vadd.f32 %v398, %v487
        %v511 = vadd.f32 %v399, %v489
        %v512 = vadd.f32 %v400, %v491
        %v513 = vadd.f32 %v401, %v493
        %v514 = vadd.f32 %v402, %v495
        %v515 = vadd.f32 %v403, %v497
        %v516 = vadd.f32 %v404, %v499
        %v517 = vadd.f32 %v405, %v501
        %vm518 = vcmask 125952
        %519 = vst.msk [vmem:[%s245] sm:$0xf] %vm518, %v510
        %520 = vst.msk [vmem:[%s245 + $0x4] sm:$0xf] %vm518, %v511
        %521 = vst.msk [vmem:[%s245 + $0x8] sm:$0xf] %vm518, %v512
        %522 = vst.msk [vmem:[%s245 + $0xc] sm:$0xf] %vm518, %v513
        %523 = vst.msk [vmem:[%s245 + $0x10] sm:$0xf] %vm518, %v514
        %524 = vst.msk [vmem:[%s245 + $0x14] sm:$0xf] %vm518, %v515
        %525 = vst.msk [vmem:[%s245 + $0x18] sm:$0xf] %vm518, %v516
        %526 = vst.msk [vmem:[%s245 + $0x1c] sm:$0xf] %vm518, %v517
        %527 = vrot.lane.b32.xlu0 %v361, 16
        %v528 = vpop.permute.xlu0 %527
        %529 = vrot.lane.b32.xlu0 %v365, 16
        %v530 = vpop.permute.xlu0 %529
        %531 = vrot.lane.b32.xlu0 %v369, 16
        %v532 = vpop.permute.xlu0 %531
        %533 = vrot.lane.b32.xlu0 %v373, 16
        %v534 = vpop.permute.xlu0 %533
        %535 = vrot.lane.b32.xlu0 %v377, 16
        %v536 = vpop.permute.xlu0 %535
        %537 = vrot.lane.b32.xlu0 %v381, 16
        %v538 = vpop.permute.xlu0 %537
        %539 = vrot.lane.b32.xlu0 %v385, 16
        %v540 = vpop.permute.xlu0 %539
        %541 = vrot.lane.b32.xlu0 %v389, 16
        %v542 = vpop.permute.xlu0 %541
        %v551 = vmul.f32 %v248, %v528
        %v552 = vmul.f32 %v249, %v530
        %v553 = vmul.f32 %v250, %v532
        %v554 = vmul.f32 %v251, %v534
        %v555 = vmul.f32 %v252, %v536
        %v556 = vmul.f32 %v253, %v538
        %v557 = vmul.f32 %v254, %v540
        %v558 = vmul.f32 %v255, %v542
        %v559 = vmul.f32 %v248, %v409
        %v560 = vmul.f32 %v249, %v413
        %v561 = vmul.f32 %v250, %v417
        %v562 = vmul.f32 %v251, %v421
        %v563 = vmul.f32 %v252, %v425
        %v564 = vmul.f32 %v253, %v429
        %v565 = vmul.f32 %v254, %v433
        %v566 = vmul.f32 %v255, %v437
        %575 = vrot.lane.b32.xlu0 %v559, 16
        %v576 = vpop.permute.xlu0 %575
        %577 = vrot.lane.b32.xlu0 %v560, 16
        %v578 = vpop.permute.xlu0 %577
        %579 = vrot.lane.b32.xlu0 %v561, 16
        %v580 = vpop.permute.xlu0 %579
        %581 = vrot.lane.b32.xlu0 %v562, 16
        %v582 = vpop.permute.xlu0 %581
        %583 = vrot.lane.b32.xlu0 %v563, 16
        %v584 = vpop.permute.xlu0 %583
        %585 = vrot.lane.b32.xlu0 %v564, 16
        %v586 = vpop.permute.xlu0 %585
        %587 = vrot.lane.b32.xlu0 %v565, 16
        %v588 = vpop.permute.xlu0 %587
        %589 = vrot.lane.b32.xlu0 %v566, 16
        %v590 = vpop.permute.xlu0 %589
        %v599 = vsub.f32 %v551, %v576
        %v600 = vsub.f32 %v552, %v578
        %v601 = vsub.f32 %v553, %v580
        %v602 = vsub.f32 %v554, %v582
        %v603 = vsub.f32 %v555, %v584
        %v604 = vsub.f32 %v556, %v586
        %v605 = vsub.f32 %v557, %v588
        %v606 = vsub.f32 %v558, %v590
        %vm607 = vcmask 257152
        %608 = vst.msk [vmem:[%s245] sm:$0xf] %vm607, %v599
        %609 = vst.msk [vmem:[%s245 + $0x4] sm:$0xf] %vm607, %v600
        %610 = vst.msk [vmem:[%s245 + $0x8] sm:$0xf] %vm607, %v601
        %611 = vst.msk [vmem:[%s245 + $0xc] sm:$0xf] %vm607, %v602
        %612 = vst.msk [vmem:[%s245 + $0x10] sm:$0xf] %vm607, %v603
        %613 = vst.msk [vmem:[%s245 + $0x14] sm:$0xf] %vm607, %v604
        %614 = vst.msk [vmem:[%s245 + $0x18] sm:$0xf] %vm607, %v605
        %615 = vst.msk [vmem:[%s245 + $0x1c] sm:$0xf] %vm607, %v606
        %s616 = sand.u32 %s123, 1
        %s617 = scalar_lea.sflag [#allocation4], %s616
        %s618 = sand.u32 %s123, 1
        %s619 = smul.addr %s618, 32
        %s620 = scalar_lea.vmem [#allocation8], %s619
        // Predicated region
        $region45: #{tpu_custom_call.1} parent=31 // pred_check
          %p621 = pneg %p133
        $region46: #{tpu_custom_call.1} parent=31 // pred_check_branch
          %623 = sbr.rel (%p621) target = $region48
        $region47: #{tpu_custom_call.1} parent=31 // pred_region
          %s624 = smul.u32 8, %s26
          %s626 = ssub.s32 512, 512
          %627 = vsyncadd %s617, %s626
          %s628 = smul.addr %s25, 8
          %s629 = sadd.s32 %s624, %s628
          %s630 = smul.addr %s629, 64
          %s631 = scalar_lea.hbm %s3, %s630
          %s632 = sshll.u32 %s620, 4
          %s633 = int_to_ptr.vmem [resolvable:$true] %s632
          %638 = dma.vmem_to_hbm [thread:$0]  %s633, 512, %s631, %s617, 64, 64, 4
        $region48: #{tpu_custom_call.1} parent=31 // pred_fallthru
          _
      $region32: #{tpu_custom_call.1} parent=5 // pred_fallthru
        _
      %p639 = scmp.le.s32.totalorder 2, %s16
      // Predicated region
      $region49: #{tpu_custom_call.1} parent=5 // pred_check
        %p640 = pneg %p639
      $region50: #{tpu_custom_call.1} parent=5 // pred_check_branch
        %642 = sbr.rel (%p640) target = $region52
      $region51: #{tpu_custom_call.1} parent=5 // pred_region
        %s643 = ssub.s32 %s16, 2
        // Predicated region
        $region53: #{tpu_custom_call.1} parent=51 // pred_check
          %p644 = pneg %p139
        $region54: #{tpu_custom_call.1} parent=51 // pred_check_branch
          %646 = sbr.rel (%p644) target = $region56
        $region55: #{tpu_custom_call.1} parent=51 // pred_region
          %s647 = sand.u32 %s124, 1
          %s648 = scalar_lea.sflag [#allocation4], %s647
          %s649 = sand.u32 %s124, 1
          %s650 = smul.addr %s649, 32
          %s651 = scalar_lea.vmem [#allocation8], %s650
          %652 = dma.done %s648, 512
        $region56: #{tpu_custom_call.1} parent=51 // pred_fallthru
          _
      $region52: #{tpu_custom_call.1} parent=5 // pred_fallthru
        _
    $region6: #{tpu_custom_call.1} parent=1 // loop_footer
      %s20 = sadd.s32 1, %s16
    $region7: #{tpu_custom_call.1} parent=1 // loop_footer_branch
      %15 = sbr.rel target = $region3
    $region8: #{tpu_custom_call.1} parent=1 // loop_exit
      _
    %653 = vsyncpa [#allocation3], 1
    %s654 = scalar_lea.sflag [#allocation3], 1
    %655 = vsyncpa %s654, 1
    %656 = vsyncpa [#allocation6], 1
    %657 = vsyncpa [#allocation4], 1
    %s658 = scalar_lea.sflag [#allocation4], 1
    %659 = vsyncpa %s658, 1

</llo_original>
